<compile_context>
chip_gen: v7x
topology: tpu7x:2x2x1
jax: 0.10.0
libtpu: 0.0.40
codegen_flags: <defaults>
</compile_context>

<pallas_src>
import functools

import jax
import jax.numpy as jnp
from jax.experimental import pallas as pl
from jax.experimental.pallas import tpu as pltpu

EPS = 1e-12  # F.normalize eps


def _vanra_rating_kernel(num_aspects, h1,
                         u_asp_ref, i_asp_ref, u_vis_ref, i_vis_ref,
                         u_off_ref, i_off_ref, g_off_ref, out_ref):
    tb = u_asp_ref.shape[0]

    # ---- aspect-based rating (fused normalize + dot, per aspect) -------------
    doc_rating = jnp.zeros((tb, 1), jnp.float32)
    for a in range(num_aspects):                      # static unroll, A is small
        lo = a * h1
        ua = u_asp_ref[:, lo:lo + h1].astype(jnp.float32)   # (TB, H)
        ia = i_asp_ref[:, lo:lo + h1].astype(jnp.float32)   # (TB, H)
        dot = jnp.sum(ua * ia, axis=-1, keepdims=True)      # (TB, 1)
        nu = jnp.maximum(jnp.sqrt(jnp.sum(ua * ua, axis=-1, keepdims=True)), EPS)
        ni = jnp.maximum(jnp.sqrt(jnp.sum(ia * ia, axis=-1, keepdims=True)), EPS)
        doc_rating = doc_rating + dot / (nu * ni)

    # ---- visual rating (same fused form) --------------------------------------
    uv = u_vis_ref[...].astype(jnp.float32)           # (TB, V)
    iv = i_vis_ref[...].astype(jnp.float32)           # (TB, V)
    v_dot = jnp.sum(uv * iv, axis=-1, keepdims=True)
    v_nu = jnp.maximum(jnp.sqrt(jnp.sum(uv * uv, axis=-1, keepdims=True)), EPS)
    v_ni = jnp.maximum(jnp.sqrt(jnp.sum(iv * iv, axis=-1, keepdims=True)), EPS)
    vis_rating = v_dot / (v_nu * v_ni)                # (TB, 1)

    # ---- combine + biases ------------------------------------------------------
    rating = (doc_rating + vis_rating) * 0.5
    rating = rating + u_off_ref[...] + i_off_ref[...]
    rating = rating + g_off_ref[0, 0]                 # scalar from SMEM
    out_ref[...] = rating.astype(out_ref.dtype)


def _round_up(x, m):
    return (x + m - 1) // m * m


def vanra_rating_pred(userAspRep, itemAspRep, userVisAttn, itemVisAttn,
                      batch_uid, batch_iid,
                      uid_userOffset_weight, iid_itemOffset_weight,
                      globalOffset, *, block_b=1024):
    """Pallas implementation of VANRA_RatingPred.forward (inference)."""
    B, A, H = userAspRep.shape
    V = userVisAttn.shape[1]
    AH = A * H

    # Embedding lookups (gathers) done as plain-JAX glue around the kernel.
    u_off = uid_userOffset_weight[batch_uid].reshape(B, 1).astype(jnp.float32)
    i_off = iid_itemOffset_weight[batch_iid].reshape(B, 1).astype(jnp.float32)
    g_off = jnp.asarray(globalOffset, jnp.float32).reshape(1, 1)

    # Fold the aspect axis into the lane dimension (lane-dense rows).
    u_asp = userAspRep.reshape(B, AH)
    i_asp = itemAspRep.reshape(B, AH)
    u_vis = userVisAttn
    i_vis = itemVisAttn

    # Batch tiling: TB multiple of 8 (f32 sublane); single tile for small B.
    block_b = max(8, _round_up(int(block_b), 8))
    TB = _round_up(B, 8) if B <= block_b else block_b
    B_pad = _round_up(B, TB)

    if B_pad != B:
        pad = ((0, B_pad - B), (0, 0))
        u_asp = jnp.pad(u_asp, pad)
        i_asp = jnp.pad(i_asp, pad)
        u_vis = jnp.pad(u_vis, pad)
        i_vis = jnp.pad(i_vis, pad)
        u_off = jnp.pad(u_off, pad)
        i_off = jnp.pad(i_off, pad)

    num_tiles = B_pad // TB

    # Double-buffered per-tile VMEM footprint + headroom (stays well under the
    # 64 MiB v7x / 128 MiB v5e-v6e physical VMEM).
    block_bytes = 4 * TB * (2 * AH + 2 * V + 3)
    vmem_limit = int(min(32 * 2**20, max(4 * 2**20, 4 * block_bytes + 2**20)))

    grid_spec = pltpu.PrefetchScalarGridSpec(
        num_scalar_prefetch=0,
        grid=(num_tiles,),
        in_specs=[
            pl.BlockSpec((TB, AH), lambda i: (i, 0)),
            pl.BlockSpec((TB, AH), lambda i: (i, 0)),
            pl.BlockSpec((TB, V), lambda i: (i, 0)),
            pl.BlockSpec((TB, V), lambda i: (i, 0)),
            pl.BlockSpec((TB, 1), lambda i: (i, 0)),
            pl.BlockSpec((TB, 1), lambda i: (i, 0)),
            pl.BlockSpec(memory_space=pltpu.MemorySpace.SMEM),   # global offset
        ],
        out_specs=pl.BlockSpec((TB, 1), lambda i: (i, 0)),
    )

    out = pl.pallas_call(
        functools.partial(_vanra_rating_kernel, A, H),
        out_shape=jax.ShapeDtypeStruct((B_pad, 1), jnp.float32),
        grid_spec=grid_spec,
        compiler_params=pltpu.CompilerParams(
            dimension_semantics=("parallel",),
            vmem_limit_bytes=vmem_limit),
    )(u_asp, i_asp, u_vis, i_vis, u_off, i_off, g_off)

    return out[:B]


def vanra_rating_pred_ref(userAspRep, itemAspRep, userVisAttn, itemVisAttn,
                          batch_uid, batch_iid,
                          uid_userOffset_weight, iid_itemOffset_weight,
                          globalOffset):
    """Pure-JAX reference mirroring the PyTorch forward."""
    def l2norm(x, axis):
        n = jnp.sqrt(jnp.sum(x * x, axis=axis, keepdims=True))
        return x / jnp.maximum(n, EPS)

    u = l2norm(userAspRep, -1)
    it = l2norm(itemAspRep, -1)
    doc = jnp.sum(jnp.sum(u * it, axis=-1), axis=-1, keepdims=True)
    uv = l2norm(userVisAttn, -1)
    iv = l2norm(itemVisAttn, -1)
    vis = jnp.sum(uv * iv, axis=-1, keepdims=True)
    rating = (doc + vis) / 2.0
    rating = rating + uid_userOffset_weight[batch_uid] + iid_itemOffset_weight[batch_iid]
    rating = rating + globalOffset.reshape(1, 1)
    return rating


if __name__ == "__main__":
    key = jax.random.PRNGKey(0)
    ks = jax.random.split(key, 9)

    # Small shapes consistent with the module's forward.
    bsz, num_aspects, h1, output_size = 8, 4, 32, 32
    num_users, num_items = 16, 16

    userAspRep = jax.random.normal(ks[0], (bsz, num_aspects, h1), jnp.float32)
    itemAspRep = jax.random.normal(ks[1], (bsz, num_aspects, h1), jnp.float32)
    userVisAttn = jax.random.normal(ks[2], (bsz, output_size), jnp.float32)
    itemVisAttn = jax.random.normal(ks[3], (bsz, output_size), jnp.float32)
    batch_uid = jax.random.randint(ks[4], (bsz,), 0, num_users)
    batch_iid = jax.random.randint(ks[5], (bsz,), 0, num_items)

    # PyTorch __init__ fills these with 0; use small nonzero values here so the
    # offset/bias path is actually exercised by the check.
    uid_userOffset_weight = 0.1 * jax.random.normal(ks[6], (num_users, 1), jnp.float32)
    iid_itemOffset_weight = 0.1 * jax.random.normal(ks[7], (num_items, 1), jnp.float32)
    globalOffset = 0.1 * jax.random.normal(ks[8], (1,), jnp.float32)

    out = vanra_rating_pred(userAspRep, itemAspRep, userVisAttn, itemVisAttn,
                            batch_uid, batch_iid,
                            uid_userOffset_weight, iid_itemOffset_weight,
                            globalOffset)
    out = jax.block_until_ready(out)
    ref = vanra_rating_pred_ref(userAspRep, itemAspRep, userVisAttn, itemVisAttn,
                                batch_uid, batch_iid,
                                uid_userOffset_weight, iid_itemOffset_weight,
                                globalOffset)
    assert out.shape == (bsz, 1), out.shape
    assert jnp.allclose(out, ref, atol=1e-5, rtol=1e-5), (out, ref)

    # Second config: exercises batch padding + multi-tile (pipelined) grid.
    bsz2 = 20
    uAsp2 = jax.random.normal(ks[0], (bsz2, num_aspects, h1), jnp.float32)
    iAsp2 = jax.random.normal(ks[1], (bsz2, num_aspects, h1), jnp.float32)
    uVis2 = jax.random.normal(ks[2], (bsz2, output_size), jnp.float32)
    iVis2 = jax.random.normal(ks[3], (bsz2, output_size), jnp.float32)
    uid2 = jax.random.randint(ks[4], (bsz2,), 0, num_users)
    iid2 = jax.random.randint(ks[5], (bsz2,), 0, num_items)
    out2 = vanra_rating_pred(uAsp2, iAsp2, uVis2, iVis2, uid2, iid2,
                             uid_userOffset_weight, iid_itemOffset_weight,
                             globalOffset, block_b=8)
    out2 = jax.block_until_ready(out2)
    ref2 = vanra_rating_pred_ref(uAsp2, iAsp2, uVis2, iVis2, uid2, iid2,
                                 uid_userOffset_weight, iid_itemOffset_weight,
                                 globalOffset)
    assert out2.shape == (bsz2, 1), out2.shape
    assert jnp.allclose(out2, ref2, atol=1e-5, rtol=1e-5), (out2, ref2)

    print("KERNEL_OK")
</pallas_src>

<mosaic_0001>
module attributes {stable_mosaic.version = 11 : i64} {
  func.func @_vanra_rating_kernel(%arg0: i32, %arg1: memref<8x128xf32, #tpu.memory_space<vmem>>, %arg2: memref<8x128xf32, #tpu.memory_space<vmem>>, %arg3: memref<8x32xf32, #tpu.memory_space<vmem>>, %arg4: memref<8x32xf32, #tpu.memory_space<vmem>>, %arg5: memref<8x1xf32, #tpu.memory_space<vmem>>, %arg6: memref<8x1xf32, #tpu.memory_space<vmem>>, %arg7: memref<1x1xf32, #tpu.memory_space<smem>>, %arg8: memref<8x1xf32, #tpu.memory_space<vmem>>) attributes {dimension_semantics = [#tpu.dimension_semantics<parallel>], iteration_bounds = array<i64: 1>, scalar_prefetch = 0 : i64, scratch_operands = 0 : i64, tpu.core_type = #tpu.core_type<tc>, window_params = [{transform_indices = @transform_0, window_bounds = array<i64: 8, 128>}, {transform_indices = @transform_1, window_bounds = array<i64: 8, 128>}, {transform_indices = @transform_2, window_bounds = array<i64: 8, 32>}, {transform_indices = @transform_3, window_bounds = array<i64: 8, 32>}, {transform_indices = @transform_4, window_bounds = array<i64: 8, 1>}, {transform_indices = @transform_5, window_bounds = array<i64: 8, 1>}, {transform_indices = @transform_6, window_bounds = array<i64: 1, 1>}, {transform_indices = @transform_7, window_bounds = array<i64: 8, 1>}]} {
    %cst = arith.constant 0.000000e+00 : f32
    %0 = vector.broadcast %cst : f32 to vector<8x1xf32>
    %c0 = arith.constant 0 : index
    %c0_0 = arith.constant 0 : index
    %1 = vector.load %arg1[%c0, %c0_0] : memref<8x128xf32, #tpu.memory_space<vmem>>, vector<8x32xf32>
    %c0_1 = arith.constant 0 : index
    %c0_2 = arith.constant 0 : index
    %2 = vector.load %arg2[%c0_1, %c0_2] : memref<8x128xf32, #tpu.memory_space<vmem>>, vector<8x32xf32>
    %3 = arith.mulf %1, %2 : vector<8x32xf32>
    %cst_3 = arith.constant dense<0.000000e+00> : vector<8xf32>
    %4 = vector.multi_reduction <add>, %3, %cst_3 [1] : vector<8x32xf32> to vector<8xf32>
    %5 = vector.shape_cast %4 : vector<8xf32> to vector<8x1xf32>
    %6 = arith.mulf %1, %1 : vector<8x32xf32>
    %cst_4 = arith.constant dense<0.000000e+00> : vector<8xf32>
    %7 = vector.multi_reduction <add>, %6, %cst_4 [1] : vector<8x32xf32> to vector<8xf32>
    %8 = vector.shape_cast %7 : vector<8xf32> to vector<8x1xf32>
    %9 = math.sqrt %8 : vector<8x1xf32>
    %cst_5 = arith.constant 9.99999996E-13 : f32
    %10 = vector.broadcast %cst_5 : f32 to vector<8x1xf32>
    %11 = arith.maximumf %9, %10 : vector<8x1xf32>
    %12 = arith.mulf %2, %2 : vector<8x32xf32>
    %cst_6 = arith.constant dense<0.000000e+00> : vector<8xf32>
    %13 = vector.multi_reduction <add>, %12, %cst_6 [1] : vector<8x32xf32> to vector<8xf32>
    %14 = vector.shape_cast %13 : vector<8xf32> to vector<8x1xf32>
    %15 = math.sqrt %14 : vector<8x1xf32>
    %cst_7 = arith.constant 9.99999996E-13 : f32
    %16 = vector.broadcast %cst_7 : f32 to vector<8x1xf32>
    %17 = arith.maximumf %15, %16 : vector<8x1xf32>
    %18 = arith.mulf %11, %17 : vector<8x1xf32>
    %19 = arith.divf %5, %18 : vector<8x1xf32>
    %20 = arith.addf %0, %19 : vector<8x1xf32>
    %c0_8 = arith.constant 0 : index
    %c32 = arith.constant 32 : index
    %21 = vector.load %arg1[%c0_8, %c32] : memref<8x128xf32, #tpu.memory_space<vmem>>, vector<8x32xf32>
    %c0_9 = arith.constant 0 : index
    %c32_10 = arith.constant 32 : index
    %22 = vector.load %arg2[%c0_9, %c32_10] : memref<8x128xf32, #tpu.memory_space<vmem>>, vector<8x32xf32>
    %23 = arith.mulf %21, %22 : vector<8x32xf32>
    %cst_11 = arith.constant dense<0.000000e+00> : vector<8xf32>
    %24 = vector.multi_reduction <add>, %23, %cst_11 [1] : vector<8x32xf32> to vector<8xf32>
    %25 = vector.shape_cast %24 : vector<8xf32> to vector<8x1xf32>
    %26 = arith.mulf %21, %21 : vector<8x32xf32>
    %cst_12 = arith.constant dense<0.000000e+00> : vector<8xf32>
    %27 = vector.multi_reduction <add>, %26, %cst_12 [1] : vector<8x32xf32> to vector<8xf32>
    %28 = vector.shape_cast %27 : vector<8xf32> to vector<8x1xf32>
    %29 = math.sqrt %28 : vector<8x1xf32>
    %cst_13 = arith.constant 9.99999996E-13 : f32
    %30 = vector.broadcast %cst_13 : f32 to vector<8x1xf32>
    %31 = arith.maximumf %29, %30 : vector<8x1xf32>
    %32 = arith.mulf %22, %22 : vector<8x32xf32>
    %cst_14 = arith.constant dense<0.000000e+00> : vector<8xf32>
    %33 = vector.multi_reduction <add>, %32, %cst_14 [1] : vector<8x32xf32> to vector<8xf32>
    %34 = vector.shape_cast %33 : vector<8xf32> to vector<8x1xf32>
    %35 = math.sqrt %34 : vector<8x1xf32>
    %cst_15 = arith.constant 9.99999996E-13 : f32
    %36 = vector.broadcast %cst_15 : f32 to vector<8x1xf32>
    %37 = arith.maximumf %35, %36 : vector<8x1xf32>
    %38 = arith.mulf %31, %37 : vector<8x1xf32>
    %39 = arith.divf %25, %38 : vector<8x1xf32>
    %40 = arith.addf %20, %39 : vector<8x1xf32>
    %c0_16 = arith.constant 0 : index
    %c64 = arith.constant 64 : index
    %41 = vector.load %arg1[%c0_16, %c64] : memref<8x128xf32, #tpu.memory_space<vmem>>, vector<8x32xf32>
    %c0_17 = arith.constant 0 : index
    %c64_18 = arith.constant 64 : index
    %42 = vector.load %arg2[%c0_17, %c64_18] : memref<8x128xf32, #tpu.memory_space<vmem>>, vector<8x32xf32>
    %43 = arith.mulf %41, %42 : vector<8x32xf32>
    %cst_19 = arith.constant dense<0.000000e+00> : vector<8xf32>
    %44 = vector.multi_reduction <add>, %43, %cst_19 [1] : vector<8x32xf32> to vector<8xf32>
    %45 = vector.shape_cast %44 : vector<8xf32> to vector<8x1xf32>
    %46 = arith.mulf %41, %41 : vector<8x32xf32>
    %cst_20 = arith.constant dense<0.000000e+00> : vector<8xf32>
    %47 = vector.multi_reduction <add>, %46, %cst_20 [1] : vector<8x32xf32> to vector<8xf32>
    %48 = vector.shape_cast %47 : vector<8xf32> to vector<8x1xf32>
    %49 = math.sqrt %48 : vector<8x1xf32>
    %cst_21 = arith.constant 9.99999996E-13 : f32
    %50 = vector.broadcast %cst_21 : f32 to vector<8x1xf32>
    %51 = arith.maximumf %49, %50 : vector<8x1xf32>
    %52 = arith.mulf %42, %42 : vector<8x32xf32>
    %cst_22 = arith.constant dense<0.000000e+00> : vector<8xf32>
    %53 = vector.multi_reduction <add>, %52, %cst_22 [1] : vector<8x32xf32> to vector<8xf32>
    %54 = vector.shape_cast %53 : vector<8xf32> to vector<8x1xf32>
    %55 = math.sqrt %54 : vector<8x1xf32>
    %cst_23 = arith.constant 9.99999996E-13 : f32
    %56 = vector.broadcast %cst_23 : f32 to vector<8x1xf32>
    %57 = arith.maximumf %55, %56 : vector<8x1xf32>
    %58 = arith.mulf %51, %57 : vector<8x1xf32>
    %59 = arith.divf %45, %58 : vector<8x1xf32>
    %60 = arith.addf %40, %59 : vector<8x1xf32>
    %c0_24 = arith.constant 0 : index
    %c96 = arith.constant 96 : index
    %61 = vector.load %arg1[%c0_24, %c96] : memref<8x128xf32, #tpu.memory_space<vmem>>, vector<8x32xf32>
    %c0_25 = arith.constant 0 : index
    %c96_26 = arith.constant 96 : index
    %62 = vector.load %arg2[%c0_25, %c96_26] : memref<8x128xf32, #tpu.memory_space<vmem>>, vector<8x32xf32>
    %63 = arith.mulf %61, %62 : vector<8x32xf32>
    %cst_27 = arith.constant dense<0.000000e+00> : vector<8xf32>
    %64 = vector.multi_reduction <add>, %63, %cst_27 [1] : vector<8x32xf32> to vector<8xf32>
    %65 = vector.shape_cast %64 : vector<8xf32> to vector<8x1xf32>
    %66 = arith.mulf %61, %61 : vector<8x32xf32>
    %cst_28 = arith.constant dense<0.000000e+00> : vector<8xf32>
    %67 = vector.multi_reduction <add>, %66, %cst_28 [1] : vector<8x32xf32> to vector<8xf32>
    %68 = vector.shape_cast %67 : vector<8xf32> to vector<8x1xf32>
    %69 = math.sqrt %68 : vector<8x1xf32>
    %cst_29 = arith.constant 9.99999996E-13 : f32
    %70 = vector.broadcast %cst_29 : f32 to vector<8x1xf32>
    %71 = arith.maximumf %69, %70 : vector<8x1xf32>
    %72 = arith.mulf %62, %62 : vector<8x32xf32>
    %cst_30 = arith.constant dense<0.000000e+00> : vector<8xf32>
    %73 = vector.multi_reduction <add>, %72, %cst_30 [1] : vector<8x32xf32> to vector<8xf32>
    %74 = vector.shape_cast %73 : vector<8xf32> to vector<8x1xf32>
    %75 = math.sqrt %74 : vector<8x1xf32>
    %cst_31 = arith.constant 9.99999996E-13 : f32
    %76 = vector.broadcast %cst_31 : f32 to vector<8x1xf32>
    %77 = arith.maximumf %75, %76 : vector<8x1xf32>
    %78 = arith.mulf %71, %77 : vector<8x1xf32>
    %79 = arith.divf %65, %78 : vector<8x1xf32>
    %80 = arith.addf %60, %79 : vector<8x1xf32>
    %c0_32 = arith.constant 0 : index
    %c0_33 = arith.constant 0 : index
    %81 = vector.load %arg3[%c0_32, %c0_33] : memref<8x32xf32, #tpu.memory_space<vmem>>, vector<8x32xf32>
    %c0_34 = arith.constant 0 : index
    %c0_35 = arith.constant 0 : index
    %82 = vector.load %arg4[%c0_34, %c0_35] : memref<8x32xf32, #tpu.memory_space<vmem>>, vector<8x32xf32>
    %83 = arith.mulf %81, %82 : vector<8x32xf32>
    %cst_36 = arith.constant dense<0.000000e+00> : vector<8xf32>
    %84 = vector.multi_reduction <add>, %83, %cst_36 [1] : vector<8x32xf32> to vector<8xf32>
    %85 = vector.shape_cast %84 : vector<8xf32> to vector<8x1xf32>
    %86 = arith.mulf %81, %81 : vector<8x32xf32>
    %cst_37 = arith.constant dense<0.000000e+00> : vector<8xf32>
    %87 = vector.multi_reduction <add>, %86, %cst_37 [1] : vector<8x32xf32> to vector<8xf32>
    %88 = vector.shape_cast %87 : vector<8xf32> to vector<8x1xf32>
    %89 = math.sqrt %88 : vector<8x1xf32>
    %cst_38 = arith.constant 9.99999996E-13 : f32
    %90 = vector.broadcast %cst_38 : f32 to vector<8x1xf32>
    %91 = arith.maximumf %89, %90 : vector<8x1xf32>
    %92 = arith.mulf %82, %82 : vector<8x32xf32>
    %cst_39 = arith.constant dense<0.000000e+00> : vector<8xf32>
    %93 = vector.multi_reduction <add>, %92, %cst_39 [1] : vector<8x32xf32> to vector<8xf32>
    %94 = vector.shape_cast %93 : vector<8xf32> to vector<8x1xf32>
    %95 = math.sqrt %94 : vector<8x1xf32>
    %cst_40 = arith.constant 9.99999996E-13 : f32
    %96 = vector.broadcast %cst_40 : f32 to vector<8x1xf32>
    %97 = arith.maximumf %95, %96 : vector<8x1xf32>
    %98 = arith.mulf %91, %97 : vector<8x1xf32>
    %99 = arith.divf %85, %98 : vector<8x1xf32>
    %100 = arith.addf %80, %99 : vector<8x1xf32>
    %cst_41 = arith.constant 5.000000e-01 : f32
    %101 = vector.broadcast %cst_41 : f32 to vector<8x1xf32>
    %102 = arith.mulf %100, %101 : vector<8x1xf32>
    %c0_42 = arith.constant 0 : index
    %c0_43 = arith.constant 0 : index
    %103 = vector.load %arg5[%c0_42, %c0_43] : memref<8x1xf32, #tpu.memory_space<vmem>>, vector<8x1xf32>
    %104 = arith.addf %102, %103 : vector<8x1xf32>
    %c0_44 = arith.constant 0 : index
    %c0_45 = arith.constant 0 : index
    %105 = vector.load %arg6[%c0_44, %c0_45] : memref<8x1xf32, #tpu.memory_space<vmem>>, vector<8x1xf32>
    %106 = arith.addf %104, %105 : vector<8x1xf32>
    %c0_46 = arith.constant 0 : index
    %c0_47 = arith.constant 0 : index
    %107 = memref.load %arg7[%c0_46, %c0_47] : memref<1x1xf32, #tpu.memory_space<smem>>
    %108 = vector.broadcast %107 : f32 to vector<8x1xf32>
    %109 = arith.addf %106, %108 : vector<8x1xf32>
    %c0_48 = arith.constant 0 : index
    %c0_49 = arith.constant 0 : index
    %110 = vector.load %arg8[%c0_48, %c0_49] : memref<8x1xf32, #tpu.memory_space<vmem>>, vector<8x1xf32>
    tpu.vector_store %arg8[%c0_48, %c0_49], %109 {strides = array<i32>} : memref<8x1xf32, #tpu.memory_space<vmem>>, vector<8x1xf32>,
    return
  }
  func.func @transform_0(%arg0: i32) -> (i32, i32) {
    %c0_i32 = arith.constant 0 : i32
    %c0_i32_0 = arith.constant 0 : i32
    return %arg0, %c0_i32 : i32, i32
  }
  func.func @transform_1(%arg0: i32) -> (i32, i32) {
    %c0_i32 = arith.constant 0 : i32
    %c0_i32_0 = arith.constant 0 : i32
    return %arg0, %c0_i32 : i32, i32
  }
  func.func @transform_2(%arg0: i32) -> (i32, i32) {
    %c0_i32 = arith.constant 0 : i32
    %c0_i32_0 = arith.constant 0 : i32
    return %arg0, %c0_i32 : i32, i32
  }
  func.func @transform_3(%arg0: i32) -> (i32, i32) {
    %c0_i32 = arith.constant 0 : i32
    %c0_i32_0 = arith.constant 0 : i32
    return %arg0, %c0_i32 : i32, i32
  }
  func.func @transform_4(%arg0: i32) -> (i32, i32) {
    %c0_i32 = arith.constant 0 : i32
    %c0_i32_0 = arith.constant 0 : i32
    return %arg0, %c0_i32 : i32, i32
  }
  func.func @transform_5(%arg0: i32) -> (i32, i32) {
    %c0_i32 = arith.constant 0 : i32
    %c0_i32_0 = arith.constant 0 : i32
    return %arg0, %c0_i32 : i32, i32
  }
  func.func @transform_6(%arg0: i32) -> (i32, i32) {
    %c0_i32 = arith.constant 0 : i32
    %c0_i32_0 = arith.constant 0 : i32
    %c0_i32_1 = arith.constant 0 : i32
    return %c0_i32, %c0_i32_0 : i32, i32
  }
  func.func @transform_7(%arg0: i32) -> (i32, i32) {
    %c0_i32 = arith.constant 0 : i32
    %c0_i32_0 = arith.constant 0 : i32
    return %arg0, %c0_i32 : i32, i32
  }
}

</mosaic_0001>

<llo_original>
// kernel: tpu_custom_call.1
$region0: #{tpu_custom_call.1}
  #allocation0 [shape = 'u32[]', space=smem, size = 0x4, offset = 0x4, fixed_abs, tag = 'smem constant byte address 0x4 - core index']
  #allocation1 [shape = 'u32[144,128]{1,0:T(1,128)}', space=vmem, size = 0x12000, scoped, tag = 'internal scratch']
  #allocation2 [shape = 'f32[1,1]{1,0:T(1,128)S(6)}', space=smem, size = 0x200, scoped, tag = 'scoped memory for tpu_custom_call.1']
  %s0 = inlined_call_operand.vmem [shape: f32[8,128], index: 0, kind: input, shape index: {}]
  %s1 = inlined_call_operand.vmem [shape: f32[8,128], index: 1, kind: input, shape index: {}]
  %s2 = inlined_call_operand.vmem [shape: f32[8,32], index: 2, kind: input, shape index: {}]
  %s3 = inlined_call_operand.vmem [shape: f32[8,32], index: 3, kind: input, shape index: {}]
  %s4 = inlined_call_operand.vmem [shape: f32[8,1], index: 4, kind: input, shape index: {}]
  %s5 = inlined_call_operand.vmem [shape: f32[8,1], index: 5, kind: input, shape index: {}]
  %s6 = inlined_call_operand.<no memory space> [shape: f32[1,1], index: 6, kind: input, shape index: {}]
  %s7 = inlined_call_operand.vmem [shape: f32[8,1], index: 7, kind: output, shape index: {}]
  %s8 = sld [smem:[#allocation0]]
  $region38: #{tpu_custom_call.1} parent=0
    _
  %s10 = ssub.s32 1, %s8
  %s11 = scalar_select 0, %s10, %s8
  %12 = sst [smem:[#allocation2]] %s6
  // Predicated region
  $region2: #{tpu_custom_call.1} parent=0 // pred_check
    _
  $region3: #{tpu_custom_call.1} parent=0 // pred_check_branch
    %14 = sbr.rel (0) target = $region5
  $region4: #{tpu_custom_call.1} parent=0 // pred_region
    _
  $region5: #{tpu_custom_call.1} parent=0 // pred_fallthru
    _
  // Predicated region
  $region6: #{tpu_custom_call.1} parent=0 // pred_check
    _
  $region7: #{tpu_custom_call.1} parent=0 // pred_check_branch
    %16 = sbr.rel (0) target = $region9
  $region8: #{tpu_custom_call.1} parent=0 // pred_region
    _
  $region9: #{tpu_custom_call.1} parent=0 // pred_fallthru
    _
  // Predicated region
  $region10: #{tpu_custom_call.1} parent=0 // pred_check
    _
  $region11: #{tpu_custom_call.1} parent=0 // pred_check_branch
    %18 = sbr.rel (0) target = $region13
  $region12: #{tpu_custom_call.1} parent=0 // pred_region
    _
  $region13: #{tpu_custom_call.1} parent=0 // pred_fallthru
    _
  // Predicated region
  $region14: #{tpu_custom_call.1} parent=0 // pred_check
    _
  $region15: #{tpu_custom_call.1} parent=0 // pred_check_branch
    %20 = sbr.rel (0) target = $region17
  $region16: #{tpu_custom_call.1} parent=0 // pred_region
    _
  $region17: #{tpu_custom_call.1} parent=0 // pred_fallthru
    _
  // Predicated region
  $region18: #{tpu_custom_call.1} parent=0 // pred_check
    _
  $region19: #{tpu_custom_call.1} parent=0 // pred_check_branch
    %22 = sbr.rel (0) target = $region21
  $region20: #{tpu_custom_call.1} parent=0 // pred_region
    _
  $region21: #{tpu_custom_call.1} parent=0 // pred_fallthru
    _
  // Predicated region
  $region22: #{tpu_custom_call.1} parent=0 // pred_check
    _
  $region23: #{tpu_custom_call.1} parent=0 // pred_check_branch
    %24 = sbr.rel (0) target = $region25
  $region24: #{tpu_custom_call.1} parent=0 // pred_region
    _
  $region25: #{tpu_custom_call.1} parent=0 // pred_fallthru
    _
  // Predicated region
  $region26: #{tpu_custom_call.1} parent=0 // pred_check
    _
  $region27: #{tpu_custom_call.1} parent=0 // pred_check_branch
    %26 = sbr.rel (0) target = $region29
  $region28: #{tpu_custom_call.1} parent=0 // pred_region
    _
  $region29: #{tpu_custom_call.1} parent=0 // pred_fallthru
    _
  %v27 = vld [vmem:[%s0] sm:$0xff]
  %v28 = vld [vmem:[%s1] sm:$0xff]
  %v29 = vmul.f32 %v27, %v28
  %vm30 = vcmask 261120
  %v31 = vsel %vm30, %v29, 0.0
  %32 = vadd.xlane.f32.xlu0 %v31
  %v33 = vpop.xlane.xlu0 %32
  %v34 = vmul.f32 %v27, %v27
  %v35 = vsel %vm30, %v34, 0.0
  %36 = vadd.xlane.f32.xlu0 %v35
  %v37 = vpop.xlane.xlu0 %36
  %v38 = vrsqrt.pop %v37
  %v39 = vmul.f32 %v37, %v38
  %vm40 = vcmp.eq.f32.partialorder %v37, inf
  %v41 = vsel %vm40, %v37, %v39
  %vm42 = vcmp.eq.f32.partialorder %v37, 0.0
  %v43 = vand.u32 %v37, 2147483648
  %v44 = vsel %vm42, %v43, %v41
  %v45 = vmax.f32 %v44, 1e-12
  %v46 = vmul.f32 %v28, %v28
  %v47 = vsel %vm30, %v46, 0.0
  %48 = vadd.xlane.f32.xlu0 %v47
  %v49 = vpop.xlane.xlu0 %48
  %v50 = vrsqrt.pop %v49
  %v51 = vmul.f32 %v49, %v50
  %vm52 = vcmp.eq.f32.partialorder %v49, inf
  %v53 = vsel %vm52, %v49, %v51
  %vm54 = vcmp.eq.f32.partialorder %v49, 0.0
  %v55 = vand.u32 %v49, 2147483648
  %v56 = vsel %vm54, %v55, %v53
  %v57 = vmax.f32 %v56, 1e-12
  %v58 = vmul.f32 %v45, %v57
  %v59 = vrcp.pop %v58
  %v60 = vmul.f32 %v33, %v59
  %v61 = vadd.f32 %v60, 0.0
  %63 = vrot.lane.b32.xlu0 %v29, 96
  %v64 = vpop.permute.xlu0 %63
  %v66 = vsel %vm30, %v64, 0.0
  %67 = vadd.xlane.f32.xlu0 %v66
  %v68 = vpop.xlane.xlu0 %67
  %70 = vrot.lane.b32.xlu0 %v34, 96
  %v71 = vpop.permute.xlu0 %70
  %v73 = vsel %vm30, %v71, 0.0
  %74 = vadd.xlane.f32.xlu0 %v73
  %v75 = vpop.xlane.xlu0 %74
  %v76 = vrsqrt.pop %v75
  %v77 = vmul.f32 %v75, %v76
  %vm78 = vcmp.eq.f32.partialorder %v75, inf
  %v79 = vsel %vm78, %v75, %v77
  %vm80 = vcmp.eq.f32.partialorder %v75, 0.0
  %v81 = vand.u32 %v75, 2147483648
  %v82 = vsel %vm80, %v81, %v79
  %v83 = vmax.f32 %v82, 1e-12
  %85 = vrot.lane.b32.xlu0 %v46, 96
  %v86 = vpop.permute.xlu0 %85
  %v88 = vsel %vm30, %v86, 0.0
  %89 = vadd.xlane.f32.xlu0 %v88
  %v90 = vpop.xlane.xlu0 %89
  %v91 = vrsqrt.pop %v90
  %v92 = vmul.f32 %v90, %v91
  %vm93 = vcmp.eq.f32.partialorder %v90, inf
  %v94 = vsel %vm93, %v90, %v92
  %vm95 = vcmp.eq.f32.partialorder %v90, 0.0
  %v96 = vand.u32 %v90, 2147483648
  %v97 = vsel %vm95, %v96, %v94
  %v98 = vmax.f32 %v97, 1e-12
  %v99 = vmul.f32 %v83, %v98
  %v100 = vrcp.pop %v99
  %v101 = vmul.f32 %v68, %v100
  %v102 = vadd.f32 %v61, %v101
  %103 = vrot.lane.b32.xlu0 %v29, 64
  %v104 = vpop.permute.xlu0 %103
  %v106 = vsel %vm30, %v104, 0.0
  %107 = vadd.xlane.f32.xlu0 %v106
  %v108 = vpop.xlane.xlu0 %107
  %109 = vrot.lane.b32.xlu0 %v34, 64
  %v110 = vpop.permute.xlu0 %109
  %v112 = vsel %vm30, %v110, 0.0
  %113 = vadd.xlane.f32.xlu0 %v112
  %v114 = vpop.xlane.xlu0 %113
  %v115 = vrsqrt.pop %v114
  %v116 = vmul.f32 %v114, %v115
  %vm117 = vcmp.eq.f32.partialorder %v114, inf
  %v118 = vsel %vm117, %v114, %v116
  %vm119 = vcmp.eq.f32.partialorder %v114, 0.0
  %v120 = vand.u32 %v114, 2147483648
  %v121 = vsel %vm119, %v120, %v118
  %v122 = vmax.f32 %v121, 1e-12
  %123 = vrot.lane.b32.xlu0 %v46, 64
  %v124 = vpop.permute.xlu0 %123
  %v126 = vsel %vm30, %v124, 0.0
  %127 = vadd.xlane.f32.xlu0 %v126
  %v128 = vpop.xlane.xlu0 %127
  %v129 = vrsqrt.pop %v128
  %v130 = vmul.f32 %v128, %v129
  %vm131 = vcmp.eq.f32.partialorder %v128, inf
  %v132 = vsel %vm131, %v128, %v130
  %vm133 = vcmp.eq.f32.partialorder %v128, 0.0
  %v134 = vand.u32 %v128, 2147483648
  %v135 = vsel %vm133, %v134, %v132
  %v136 = vmax.f32 %v135, 1e-12
  %v137 = vmul.f32 %v122, %v136
  %v138 = vrcp.pop %v137
  %v139 = vmul.f32 %v108, %v138
  %v140 = vadd.f32 %v102, %v139
  %141 = vrot.lane.b32.xlu0 %v29, 32
  %v142 = vpop.permute.xlu0 %141
  %v144 = vsel %vm30, %v142, 0.0
  %145 = vadd.xlane.f32.xlu0 %v144
  %v146 = vpop.xlane.xlu0 %145
  %147 = vrot.lane.b32.xlu0 %v34, 32
  %v148 = vpop.permute.xlu0 %147
  %v150 = vsel %vm30, %v148, 0.0
  %151 = vadd.xlane.f32.xlu0 %v150
  %v152 = vpop.xlane.xlu0 %151
  %v153 = vrsqrt.pop %v152
  %v154 = vmul.f32 %v152, %v153
  %vm155 = vcmp.eq.f32.partialorder %v152, inf
  %v156 = vsel %vm155, %v152, %v154
  %vm157 = vcmp.eq.f32.partialorder %v152, 0.0
  %v158 = vand.u32 %v152, 2147483648
  %v159 = vsel %vm157, %v158, %v156
  %v160 = vmax.f32 %v159, 1e-12
  %161 = vrot.lane.b32.xlu0 %v46, 32
  %v162 = vpop.permute.xlu0 %161
  %v164 = vsel %vm30, %v162, 0.0
  %165 = vadd.xlane.f32.xlu0 %v164
  %v166 = vpop.xlane.xlu0 %165
  %v167 = vrsqrt.pop %v166
  %v168 = vmul.f32 %v166, %v167
  %vm169 = vcmp.eq.f32.partialorder %v166, inf
  %v170 = vsel %vm169, %v166, %v168
  %vm171 = vcmp.eq.f32.partialorder %v166, 0.0
  %v172 = vand.u32 %v166, 2147483648
  %v173 = vsel %vm171, %v172, %v170
  %v174 = vmax.f32 %v173, 1e-12
  %v175 = vmul.f32 %v160, %v174
  %v176 = vrcp.pop %v175
  %v177 = vmul.f32 %v146, %v176
  %v178 = vadd.f32 %v140, %v177
  %v179 = vld [vmem:[%s2] sm:$0xff]
  %v180 = vld [vmem:[%s3] sm:$0xff]
  %v181 = vmul.f32 %v179, %v180
  %v182 = vsel %vm30, %v181, 0.0
  %183 = vadd.xlane.f32.xlu0 %v182
  %v184 = vpop.xlane.xlu0 %183
  %v185 = vmul.f32 %v179, %v179
  %v186 = vsel %vm30, %v185, 0.0
  %187 = vadd.xlane.f32.xlu0 %v186
  %v188 = vpop.xlane.xlu0 %187
  %v189 = vrsqrt.pop %v188
  %v190 = vmul.f32 %v188, %v189
  %vm191 = vcmp.eq.f32.partialorder %v188, inf
  %v192 = vsel %vm191, %v188, %v190
  %vm193 = vcmp.eq.f32.partialorder %v188, 0.0
  %v194 = vand.u32 %v188, 2147483648
  %v195 = vsel %vm193, %v194, %v192
  %v196 = vmax.f32 %v195, 1e-12
  %v197 = vmul.f32 %v180, %v180
  %v198 = vsel %vm30, %v197, 0.0
  %199 = vadd.xlane.f32.xlu0 %v198
  %v200 = vpop.xlane.xlu0 %199
  %v201 = vrsqrt.pop %v200
  %v202 = vmul.f32 %v200, %v201
  %vm203 = vcmp.eq.f32.partialorder %v200, inf
  %v204 = vsel %vm203, %v200, %v202
  %vm205 = vcmp.eq.f32.partialorder %v200, 0.0
  %v206 = vand.u32 %v200, 2147483648
  %v207 = vsel %vm205, %v206, %v204
  %v208 = vmax.f32 %v207, 1e-12
  %v209 = vmul.f32 %v196, %v208
  %v210 = vrcp.pop %v209
  %v211 = vmul.f32 %v184, %v210
  %v212 = vadd.f32 %v178, %v211
  %v213 = vmul.f32 %v212, 0.5
  %v214 = vld [vmem:[%s4] sm:$0xff]
  %v215 = vadd.f32 %v213, %v214
  %v216 = vld [vmem:[%s5] sm:$0xff]
  %v217 = vadd.f32 %v215, %v216
  %s218 = sld [smem:[#allocation2]]
  %v219 = vstv %s218
  %v220 = vadd.f32 %v217, %v219
  %vm221 = vcmask 7168
  %222 = vst.msk [vmem:[%s7] sm:$0xff] %vm221, %v220
  // Predicated region
  $region30: #{tpu_custom_call.1} parent=0 // pred_check
    _
  $region31: #{tpu_custom_call.1} parent=0 // pred_check_branch
    %224 = sbr.rel (0) target = $region33
  $region32: #{tpu_custom_call.1} parent=0 // pred_region
    _
  $region33: #{tpu_custom_call.1} parent=0 // pred_fallthru
    _
  // Predicated region
  $region34: #{tpu_custom_call.1} parent=0 // pred_check
    _
  $region35: #{tpu_custom_call.1} parent=0 // pred_check_branch
    %226 = sbr.rel (0) target = $region37
  $region36: #{tpu_custom_call.1} parent=0 // pred_region
    _
  $region37: #{tpu_custom_call.1} parent=0 // pred_fallthru
    _

</llo_original>
